<compile_context>
chip_gen: v6e
topology: v6e:2x2x1
jax: 0.10.0
libtpu: 0.0.40
codegen_flags: <defaults>
</compile_context>

<pallas_src>
import functools

import jax
import jax.numpy as jnp
from jax import lax
from jax.experimental import pallas as pl
from jax.experimental.pallas import tpu as pltpu


_VMEM = pl.BlockSpec(memory_space=pltpu.MemorySpace.VMEM)
_HALO = 8  # front halo = one sublane tile -> aligned bulk stores


def _pad128(n):
    return -(-n // 128) * 128


# ----------------------------- fused Pallas kernel -------------------------

def _fused_kernel(x_ref, w1_ref, w2_ref, w3_ref, wfc1_ref, wih_ref, wfc2_ref,
                  bias_ref, out_ref,
                  xs_ref, a1_ref, a2_ref,
                  *, hidden, b_offs):
    B, L0, _ = x_ref.shape            # channel-last input (B, L, 1)
    L1, L2, L3 = L0 // 2, L0 // 4, L0 // 8
    C1 = w1_ref.shape[2]              # 16
    C2 = w2_ref.shape[1]              # 32
    C3 = w3_ref.shape[1]              # 64
    E = wfc1_ref.shape[1]
    NC = wfc2_ref.shape[1]
    o_b1, o_b2, o_b3, o_bfc1, o_blstm, o_bfc2 = b_offs

    # static-offset slices out of the packed bias operand
    b1 = bias_ref[:, o_b1:o_b1 + C1]
    b2 = bias_ref[:, o_b2:o_b2 + C2]
    b3 = bias_ref[:, o_b3:o_b3 + C3]
    bfc1 = bias_ref[:, o_bfc1:o_bfc1 + E]
    blstm = bias_ref[:, o_blstm:o_blstm + 4 * hidden]
    bfc2 = bias_ref[:, o_bfc2:o_bfc2 + NC]

    # ---- stage input: zero only the 8-row front halo (only row HALO-1 is
    #      read), then one aligned bulk store of the data rows -----------------
    xs_ref[:, 0:_HALO, :] = jnp.zeros((B, _HALO, 1), xs_ref.dtype)
    xs_ref[:, _HALO:_HALO + L0, :] = x_ref[...]

    # ---- conv1 (Cin=1, stride=2, k=3): 3 tap broadcast-muls on the VPU ------
    acc1 = xs_ref[:, pl.ds(_HALO - 1 + 0, L1, 2), :] * w1_ref[0]   # (B,L1,1)*(1,C1)
    acc1 = acc1 + xs_ref[:, pl.ds(_HALO - 1 + 1, L1, 2), :] * w1_ref[1]
    acc1 = acc1 + xs_ref[:, pl.ds(_HALO - 1 + 2, L1, 2), :] * w1_ref[2]
    a1 = jnp.maximum(acc1 + b1, 0.0)                               # (B, L1, C1)
    a1_ref[:, 0:_HALO, :] = jnp.zeros((B, _HALO, C1), a1_ref.dtype)
    a1_ref[:, _HALO:_HALO + L1, :] = a1

    # ---- conv2: im2col by lane-concat of the 3 taps -> ONE matmul (K=3*C1) --
    x2 = jnp.concatenate(
        [a1_ref[:, pl.ds(_HALO - 1 + t, L2, 2), :] for t in range(3)],
        axis=-1).reshape(B * L2, 3 * C1)
    a2 = jnp.maximum(
        jnp.dot(x2, w2_ref[...], preferred_element_type=jnp.float32) + b2, 0.0)
    a2_ref[:, 0:_HALO, :] = jnp.zeros((B, _HALO, C2), a2_ref.dtype)
    a2_ref[:, _HALO:_HALO + L2, :] = a2.reshape(B, L2, C2)

    # ---- conv3 (K=3*C2) + mean over length (== torch.mean(x, dim=2)) -------
    x3 = jnp.concatenate(
        [a2_ref[:, pl.ds(_HALO - 1 + t, L3, 2), :] for t in range(3)],
        axis=-1).reshape(B * L3, 3 * C2)
    a3 = jnp.maximum(
        jnp.dot(x3, w3_ref[...], preferred_element_type=jnp.float32) + b3,
        0.0).reshape(B, L3, C3)
    pooled = jnp.mean(a3, axis=1)                                  # (B, C3)

    # ---- feature Linear ------------------------------------------------------
    emb = jnp.dot(pooled, wfc1_ref[...],
                  preferred_element_type=jnp.float32) + bfc1

    # ---- single-step LSTM with h0 = c0 = 0:
    #      gates = emb @ W_ih^T + b_ih + b_hh   (h0 @ W_hh^T == 0, f*c0 == 0)
    gates = jnp.dot(emb, wih_ref[...],
                    preferred_element_type=jnp.float32) + blstm
    i = jax.nn.sigmoid(gates[:, 0 * hidden:1 * hidden])
    g = jnp.tanh(gates[:, 2 * hidden:3 * hidden])
    o = jax.nn.sigmoid(gates[:, 3 * hidden:4 * hidden])
    h = o * jnp.tanh(i * g)

    # ---- classifier Linear ---------------------------------------------------
    out_ref[...] = jnp.dot(h, wfc2_ref[...],
                           preferred_element_type=jnp.float32) + bfc2


# ----------------------------- wrapper --------------------------------------

def forward(x, p):
    """x: (B, 1, L) float32 -> logits (B, num_classes)."""
    B, cin, L = x.shape
    # L % 64 keeps every stage length (L, L/2, L/4, L/8) a multiple of 8 so all
    # staging stores are sublane-aligned and the (B,L,C)->(B*L,C) reshapes are
    # relayout-free views.
    assert cin == 1 and L % 64 == 0
    H = int(p["hidden_size"])
    C1 = p["w_conv1"].shape[0]
    C2 = p["w_conv2"].shape[0]
    C3 = p["w_conv3"].shape[0]
    E = p["w_fc1"].shape[0]
    NC = p["w_fc2"].shape[0]
    L1, L2 = L // 2, L // 4

    # Channel-last view of the NCW input (Cin == 1 -> free reshape, no transpose).
    x_nlc = x.reshape(B, L, 1)

    # conv weight w[co, ci, t] -> per-tap (K, Cin, Cout); conv2/conv3 are
    # tap-concatenated to (3*Cin, Cout) so each conv is a single MXU matmul.
    w1 = jnp.transpose(p["w_conv1"], (2, 1, 0))                     # (3, 1, C1)
    w2 = jnp.transpose(p["w_conv2"], (2, 1, 0)).reshape(3 * C1, C2)  # (48, 32)
    w3 = jnp.transpose(p["w_conv3"], (2, 1, 0)).reshape(3 * C2, C3)  # (96, 64)

    # Pack all biases into one lane-dense operand at 128-aligned static offsets.
    widths = (C1, C2, C3, E, 4 * H, NC)
    vals = (p["b_conv1"], p["b_conv2"], p["b_conv3"], p["b_fc1"],
            p["b_ih"] + p["b_hh"], p["b_fc2"])
    offs, total = [], 0
    for w_ in widths:
        offs.append(total)
        total += _pad128(w_)
    biases = jnp.zeros((1, total), jnp.float32)
    for o_, v_ in zip(offs, vals):
        biases = biases.at[0, o_:o_ + v_.shape[0]].set(v_)

    kernel = functools.partial(_fused_kernel, hidden=H, b_offs=tuple(offs))
    return pl.pallas_call(
        kernel,
        out_shape=jax.ShapeDtypeStruct((B, NC), jnp.float32),
        in_specs=[_VMEM] * 8,
        out_specs=_VMEM,
        scratch_shapes=[
            pltpu.VMEM((B, L + _HALO, 1), jnp.float32),      # padded input
            pltpu.VMEM((B, L1 + _HALO, C1), jnp.float32),    # padded conv1 out
            pltpu.VMEM((B, L2 + _HALO, C2), jnp.float32),    # padded conv2 out
        ],
    )(x_nlc, w1, w2, w3,
      p["w_fc1"].T, p["w_ih"].T, p["w_fc2"].T, biases)


# ----------------------------- reference (pure JAX) ------------------------

def reference_forward(x, p):
    a = x
    for w, b in ((p["w_conv1"], p["b_conv1"]),
                 (p["w_conv2"], p["b_conv2"]),
                 (p["w_conv3"], p["b_conv3"])):
        a = lax.conv_general_dilated(
            a, w, window_strides=(2,), padding=[(1, 1)],
            dimension_numbers=("NCH", "OIH", "NCH"))
        a = jnp.maximum(a + b[None, :, None], 0.0)
    pooled = jnp.mean(a, axis=2)                              # (B, 64)
    emb = pooled @ p["w_fc1"].T + p["b_fc1"]
    H = p["hidden_size"]
    gates = emb @ p["w_ih"].T + p["b_ih"] + p["b_hh"]
    i = jax.nn.sigmoid(gates[:, 0 * H:1 * H])
    g = jnp.tanh(gates[:, 2 * H:3 * H])
    o = jax.nn.sigmoid(gates[:, 3 * H:4 * H])
    h = o * jnp.tanh(i * g)
    return h @ p["w_fc2"].T + p["b_fc2"]


# ----------------------------- params --------------------------------------

def init_params(key, embedding_dim=32, hidden_size=128, num_classes=8):
    ks = jax.random.split(key, 12)
    n = jax.random.normal
    p = {
        "w_conv1": n(ks[0], (16, 1, 3), jnp.float32) * 0.3,
        "b_conv1": n(ks[1], (16,), jnp.float32) * 0.1,
        "w_conv2": n(ks[2], (32, 16, 3), jnp.float32) * 0.1,
        "b_conv2": n(ks[3], (32,), jnp.float32) * 0.1,
        "w_conv3": n(ks[4], (64, 32, 3), jnp.float32) * 0.1,
        "b_conv3": n(ks[5], (64,), jnp.float32) * 0.1,
        "w_fc1": n(ks[6], (embedding_dim, 64), jnp.float32) * 0.1,
        "b_fc1": n(ks[7], (embedding_dim,), jnp.float32) * 0.1,
        "w_ih": n(ks[8], (4 * hidden_size, embedding_dim), jnp.float32) * 0.1,
        "w_hh": jnp.zeros((4 * hidden_size, hidden_size), jnp.float32),  # unused: h0 == 0
        "b_ih": n(ks[9], (4 * hidden_size,), jnp.float32) * 0.1,
        "b_hh": n(ks[10], (4 * hidden_size,), jnp.float32) * 0.1,
        "w_fc2": n(ks[11], (num_classes, hidden_size), jnp.float32) * 0.1,
        "b_fc2": jnp.zeros((num_classes,), jnp.float32),
        "hidden_size": hidden_size,
    }
    return p


# ----------------------------- main -----------------------------------------

if __name__ == "__main__":
    # hidden_size must be 128 (the PyTorch forward hardcodes h0/c0 of width 128),
    # num_layers = 1 (h0 has leading dim 1).
    B, L = 2, 64
    embedding_dim, hidden_size, num_classes = 32, 128, 8

    key = jax.random.PRNGKey(0)
    kx, kp = jax.random.split(key)
    x = jax.random.normal(kx, (B, 1, L), jnp.float32)
    params = init_params(kp, embedding_dim, hidden_size, num_classes)

    out = forward(x, params)
    out = jax.block_until_ready(out)

    ref = jax.block_until_ready(reference_forward(x, params))
    assert out.shape == (B, num_classes)
    assert jnp.allclose(out, ref, atol=2e-3, rtol=2e-3), (out, ref)

    print("KERNEL_OK")
</pallas_src>

<mosaic_0001>
module attributes {stable_mosaic.version = 11 : i64} {
  func.func @_fused_kernel(%arg0: memref<2x64x1xf32, #tpu.memory_space<vmem>>, %arg1: memref<3x1x16xf32, #tpu.memory_space<vmem>>, %arg2: memref<48x32xf32, #tpu.memory_space<vmem>>, %arg3: memref<96x64xf32, #tpu.memory_space<vmem>>, %arg4: memref<64x32xf32, #tpu.memory_space<vmem>>, %arg5: memref<32x512xf32, #tpu.memory_space<vmem>>, %arg6: memref<128x8xf32, #tpu.memory_space<vmem>>, %arg7: memref<1x1152xf32, #tpu.memory_space<vmem>>, %arg8: memref<2x8xf32, #tpu.memory_space<vmem>>, %arg9: memref<2x72x1xf32, #tpu.memory_space<vmem>>, %arg10: memref<2x40x16xf32, #tpu.memory_space<vmem>>, %arg11: memref<2x24x32xf32, #tpu.memory_space<vmem>>) attributes {dimension_semantics = [], scalar_prefetch = 0 : i64, scratch_operands = 3 : i64, tpu.core_type = #tpu.core_type<tc>} {
    %c0 = arith.constant 0 : index
    %c0_0 = arith.constant 0 : index
    %0 = vector.load %arg7[%c0, %c0_0] : memref<1x1152xf32, #tpu.memory_space<vmem>>, vector<1x16xf32>
    %c0_1 = arith.constant 0 : index
    %c128 = arith.constant 128 : index
    %1 = vector.load %arg7[%c0_1, %c128] : memref<1x1152xf32, #tpu.memory_space<vmem>>, vector<1x32xf32>
    %c0_2 = arith.constant 0 : index
    %c256 = arith.constant 256 : index
    %2 = vector.load %arg7[%c0_2, %c256] : memref<1x1152xf32, #tpu.memory_space<vmem>>, vector<1x64xf32>
    %c0_3 = arith.constant 0 : index
    %c384 = arith.constant 384 : index
    %3 = vector.load %arg7[%c0_3, %c384] : memref<1x1152xf32, #tpu.memory_space<vmem>>, vector<1x32xf32>
    %c0_4 = arith.constant 0 : index
    %c512 = arith.constant 512 : index
    %4 = vector.load %arg7[%c0_4, %c512] : memref<1x1152xf32, #tpu.memory_space<vmem>>, vector<1x512xf32>
    %c0_5 = arith.constant 0 : index
    %c1024 = arith.constant 1024 : index
    %5 = vector.load %arg7[%c0_5, %c1024] : memref<1x1152xf32, #tpu.memory_space<vmem>>, vector<1x8xf32>
    %cst = arith.constant 0.000000e+00 : f32
    %6 = vector.broadcast %cst : f32 to vector<2x8x1xf32>
    %c0_6 = arith.constant 0 : index
    %c0_7 = arith.constant 0 : index
    %c0_8 = arith.constant 0 : index
    %7 = vector.load %arg9[%c0_6, %c0_7, %c0_8] : memref<2x72x1xf32, #tpu.memory_space<vmem>>, vector<2x8x1xf32>
    tpu.vector_store %arg9[%c0_6, %c0_7, %c0_8], %6 {strides = array<i32>} : memref<2x72x1xf32, #tpu.memory_space<vmem>>, vector<2x8x1xf32>,
    %c0_9 = arith.constant 0 : index
    %c0_10 = arith.constant 0 : index
    %c0_11 = arith.constant 0 : index
    %8 = vector.load %arg0[%c0_9, %c0_10, %c0_11] : memref<2x64x1xf32, #tpu.memory_space<vmem>>, vector<2x64x1xf32>
    %c0_12 = arith.constant 0 : index
    %c8 = arith.constant 8 : index
    %c0_13 = arith.constant 0 : index
    %9 = vector.load %arg9[%c0_12, %c8, %c0_13] : memref<2x72x1xf32, #tpu.memory_space<vmem>>, vector<2x64x1xf32>
    tpu.vector_store %arg9[%c0_12, %c8, %c0_13], %8 {strides = array<i32>} : memref<2x72x1xf32, #tpu.memory_space<vmem>>, vector<2x64x1xf32>,
    %c0_14 = arith.constant 0 : index
    %c7 = arith.constant 7 : index
    %c0_15 = arith.constant 0 : index
    %10 = tpu.strided_load %arg9[%c0_14, %c7, %c0_15] {strides = array<i32: 1, 2, 1>} : memref<2x72x1xf32, #tpu.memory_space<vmem>>, vector<2x32x1xf32>
    %c0_16 = arith.constant 0 : index
    %c0_17 = arith.constant 0 : index
    %c0_18 = arith.constant 0 : index
    %11 = vector.load %arg1[%c0_16, %c0_17, %c0_18] : memref<3x1x16xf32, #tpu.memory_space<vmem>>, vector<1x1x16xf32>
    %12 = vector.shape_cast %11 : vector<1x1x16xf32> to vector<1x16xf32>
    %13 = vector.shape_cast %12 : vector<1x16xf32> to vector<1x1x16xf32>
    %14 = vector.broadcast %10 : vector<2x32x1xf32> to vector<2x32x16xf32>
    %15 = vector.broadcast %13 : vector<1x1x16xf32> to vector<2x32x16xf32>
    %16 = arith.mulf %14, %15 : vector<2x32x16xf32>
    %c0_19 = arith.constant 0 : index
    %c8_20 = arith.constant 8 : index
    %c0_21 = arith.constant 0 : index
    %17 = tpu.strided_load %arg9[%c0_19, %c8_20, %c0_21] {strides = array<i32: 1, 2, 1>} : memref<2x72x1xf32, #tpu.memory_space<vmem>>, vector<2x32x1xf32>
    %c1 = arith.constant 1 : index
    %c0_22 = arith.constant 0 : index
    %c0_23 = arith.constant 0 : index
    %18 = vector.load %arg1[%c1, %c0_22, %c0_23] : memref<3x1x16xf32, #tpu.memory_space<vmem>>, vector<1x1x16xf32>
    %19 = vector.shape_cast %18 : vector<1x1x16xf32> to vector<1x16xf32>
    %20 = vector.shape_cast %19 : vector<1x16xf32> to vector<1x1x16xf32>
    %21 = vector.broadcast %17 : vector<2x32x1xf32> to vector<2x32x16xf32>
    %22 = vector.broadcast %20 : vector<1x1x16xf32> to vector<2x32x16xf32>
    %23 = arith.mulf %21, %22 : vector<2x32x16xf32>
    %24 = arith.addf %16, %23 : vector<2x32x16xf32>
    %c0_24 = arith.constant 0 : index
    %c9 = arith.constant 9 : index
    %c0_25 = arith.constant 0 : index
    %25 = tpu.strided_load %arg9[%c0_24, %c9, %c0_25] {strides = array<i32: 1, 2, 1>} : memref<2x72x1xf32, #tpu.memory_space<vmem>>, vector<2x32x1xf32>
    %c2 = arith.constant 2 : index
    %c0_26 = arith.constant 0 : index
    %c0_27 = arith.constant 0 : index
    %26 = vector.load %arg1[%c2, %c0_26, %c0_27] : memref<3x1x16xf32, #tpu.memory_space<vmem>>, vector<1x1x16xf32>
    %27 = vector.shape_cast %26 : vector<1x1x16xf32> to vector<1x16xf32>
    %28 = vector.shape_cast %27 : vector<1x16xf32> to vector<1x1x16xf32>
    %29 = vector.broadcast %25 : vector<2x32x1xf32> to vector<2x32x16xf32>
    %30 = vector.broadcast %28 : vector<1x1x16xf32> to vector<2x32x16xf32>
    %31 = arith.mulf %29, %30 : vector<2x32x16xf32>
    %32 = arith.addf %24, %31 : vector<2x32x16xf32>
    %33 = vector.shape_cast %0 : vector<1x16xf32> to vector<1x1x16xf32>
    %34 = vector.broadcast %33 : vector<1x1x16xf32> to vector<2x32x16xf32>
    %35 = arith.addf %32, %34 : vector<2x32x16xf32>
    %cst_28 = arith.constant 0.000000e+00 : f32
    %36 = vector.broadcast %cst_28 : f32 to vector<2x32x16xf32>
    %37 = arith.maximumf %35, %36 : vector<2x32x16xf32>
    %cst_29 = arith.constant 0.000000e+00 : f32
    %38 = vector.broadcast %cst_29 : f32 to vector<2x8x16xf32>
    %c0_30 = arith.constant 0 : index
    %c0_31 = arith.constant 0 : index
    %c0_32 = arith.constant 0 : index
    %39 = vector.load %arg10[%c0_30, %c0_31, %c0_32] : memref<2x40x16xf32, #tpu.memory_space<vmem>>, vector<2x8x16xf32>
    tpu.vector_store %arg10[%c0_30, %c0_31, %c0_32], %38 {strides = array<i32>} : memref<2x40x16xf32, #tpu.memory_space<vmem>>, vector<2x8x16xf32>,
    %c0_33 = arith.constant 0 : index
    %c8_34 = arith.constant 8 : index
    %c0_35 = arith.constant 0 : index
    %40 = vector.load %arg10[%c0_33, %c8_34, %c0_35] : memref<2x40x16xf32, #tpu.memory_space<vmem>>, vector<2x32x16xf32>
    tpu.vector_store %arg10[%c0_33, %c8_34, %c0_35], %37 {strides = array<i32>} : memref<2x40x16xf32, #tpu.memory_space<vmem>>, vector<2x32x16xf32>,
    %c0_36 = arith.constant 0 : index
    %c7_37 = arith.constant 7 : index
    %c0_38 = arith.constant 0 : index
    %41 = tpu.strided_load %arg10[%c0_36, %c7_37, %c0_38] {strides = array<i32: 1, 2, 1>} : memref<2x40x16xf32, #tpu.memory_space<vmem>>, vector<2x16x16xf32>
    %c0_39 = arith.constant 0 : index
    %c8_40 = arith.constant 8 : index
    %c0_41 = arith.constant 0 : index
    %42 = tpu.strided_load %arg10[%c0_39, %c8_40, %c0_41] {strides = array<i32: 1, 2, 1>} : memref<2x40x16xf32, #tpu.memory_space<vmem>>, vector<2x16x16xf32>
    %c0_42 = arith.constant 0 : index
    %c9_43 = arith.constant 9 : index
    %c0_44 = arith.constant 0 : index
    %43 = tpu.strided_load %arg10[%c0_42, %c9_43, %c0_44] {strides = array<i32: 1, 2, 1>} : memref<2x40x16xf32, #tpu.memory_space<vmem>>, vector<2x16x16xf32>
    %44 = tpu.concatenate %41, %42, %43 in 2 : vector<2x16x16xf32>, vector<2x16x16xf32>, vector<2x16x16xf32> -> vector<2x16x48xf32>
    %45 = vector.shape_cast %44 : vector<2x16x48xf32> to vector<32x48xf32>
    %c0_45 = arith.constant 0 : index
    %c0_46 = arith.constant 0 : index
    %46 = vector.load %arg2[%c0_45, %c0_46] : memref<48x32xf32, #tpu.memory_space<vmem>>, vector<48x32xf32>
    %cst_47 = arith.constant dense<0.000000e+00> : vector<32x32xf32>
    %47 = tpu.matmul %45, %46, %cst_47 {dimension_numbers = #tpu.dot_dimension_numbers<[1], [0], [0], [1], [0, 0, 1, 1], [], []>} : vector<32x48xf32>, vector<48x32xf32>, vector<32x32xf32> -> vector<32x32xf32>
    %48 = vector.broadcast %1 : vector<1x32xf32> to vector<32x32xf32>
    %49 = arith.addf %47, %48 : vector<32x32xf32>
    %cst_48 = arith.constant 0.000000e+00 : f32
    %50 = vector.broadcast %cst_48 : f32 to vector<32x32xf32>
    %51 = arith.maximumf %49, %50 : vector<32x32xf32>
    %cst_49 = arith.constant 0.000000e+00 : f32
    %52 = vector.broadcast %cst_49 : f32 to vector<2x8x32xf32>
    %c0_50 = arith.constant 0 : index
    %c0_51 = arith.constant 0 : index
    %c0_52 = arith.constant 0 : index
    %53 = vector.load %arg11[%c0_50, %c0_51, %c0_52] : memref<2x24x32xf32, #tpu.memory_space<vmem>>, vector<2x8x32xf32>
    tpu.vector_store %arg11[%c0_50, %c0_51, %c0_52], %52 {strides = array<i32>} : memref<2x24x32xf32, #tpu.memory_space<vmem>>, vector<2x8x32xf32>,
    %54 = vector.shape_cast %51 : vector<32x32xf32> to vector<2x16x32xf32>
    %c0_53 = arith.constant 0 : index
    %c8_54 = arith.constant 8 : index
    %c0_55 = arith.constant 0 : index
    %55 = vector.load %arg11[%c0_53, %c8_54, %c0_55] : memref<2x24x32xf32, #tpu.memory_space<vmem>>, vector<2x16x32xf32>
    tpu.vector_store %arg11[%c0_53, %c8_54, %c0_55], %54 {strides = array<i32>} : memref<2x24x32xf32, #tpu.memory_space<vmem>>, vector<2x16x32xf32>,
    %c0_56 = arith.constant 0 : index
    %c7_57 = arith.constant 7 : index
    %c0_58 = arith.constant 0 : index
    %56 = tpu.strided_load %arg11[%c0_56, %c7_57, %c0_58] {strides = array<i32: 1, 2, 1>} : memref<2x24x32xf32, #tpu.memory_space<vmem>>, vector<2x8x32xf32>
    %c0_59 = arith.constant 0 : index
    %c8_60 = arith.constant 8 : index
    %c0_61 = arith.constant 0 : index
    %57 = tpu.strided_load %arg11[%c0_59, %c8_60, %c0_61] {strides = array<i32: 1, 2, 1>} : memref<2x24x32xf32, #tpu.memory_space<vmem>>, vector<2x8x32xf32>
    %c0_62 = arith.constant 0 : index
    %c9_63 = arith.constant 9 : index
    %c0_64 = arith.constant 0 : index
    %58 = tpu.strided_load %arg11[%c0_62, %c9_63, %c0_64] {strides = array<i32: 1, 2, 1>} : memref<2x24x32xf32, #tpu.memory_space<vmem>>, vector<2x8x32xf32>
    %59 = tpu.concatenate %56, %57, %58 in 2 : vector<2x8x32xf32>, vector<2x8x32xf32>, vector<2x8x32xf32> -> vector<2x8x96xf32>
    %60 = vector.shape_cast %59 : vector<2x8x96xf32> to vector<16x96xf32>
    %c0_65 = arith.constant 0 : index
    %c0_66 = arith.constant 0 : index
    %61 = vector.load %arg3[%c0_65, %c0_66] : memref<96x64xf32, #tpu.memory_space<vmem>>, vector<96x64xf32>
    %cst_67 = arith.constant dense<0.000000e+00> : vector<16x64xf32>
    %62 = tpu.matmul %60, %61, %cst_67 {dimension_numbers = #tpu.dot_dimension_numbers<[1], [0], [0], [1], [0, 0, 1, 1], [], []>} : vector<16x96xf32>, vector<96x64xf32>, vector<16x64xf32> -> vector<16x64xf32>
    %63 = vector.broadcast %2 : vector<1x64xf32> to vector<16x64xf32>
    %64 = arith.addf %62, %63 : vector<16x64xf32>
    %cst_68 = arith.constant 0.000000e+00 : f32
    %65 = vector.broadcast %cst_68 : f32 to vector<16x64xf32>
    %66 = arith.maximumf %64, %65 : vector<16x64xf32>
    %67 = vector.shape_cast %66 : vector<16x64xf32> to vector<2x8x64xf32>
    %cst_69 = arith.constant dense<0.000000e+00> : vector<2x64xf32>
    %68 = vector.multi_reduction <add>, %67, %cst_69 [1] : vector<2x8x64xf32> to vector<2x64xf32>
    %cst_70 = arith.constant 8.000000e+00 : f32
    %69 = vector.broadcast %cst_70 : f32 to vector<2x64xf32>
    %70 = arith.divf %68, %69 : vector<2x64xf32>
    %c0_71 = arith.constant 0 : index
    %c0_72 = arith.constant 0 : index
    %71 = vector.load %arg4[%c0_71, %c0_72] : memref<64x32xf32, #tpu.memory_space<vmem>>, vector<64x32xf32>
    %cst_73 = arith.constant dense<0.000000e+00> : vector<2x32xf32>
    %72 = tpu.matmul %70, %71, %cst_73 {dimension_numbers = #tpu.dot_dimension_numbers<[1], [0], [0], [1], [0, 0, 1, 1], [], []>} : vector<2x64xf32>, vector<64x32xf32>, vector<2x32xf32> -> vector<2x32xf32>
    %73 = vector.broadcast %3 : vector<1x32xf32> to vector<2x32xf32>
    %74 = arith.addf %72, %73 : vector<2x32xf32>
    %c0_74 = arith.constant 0 : index
    %c0_75 = arith.constant 0 : index
    %75 = vector.load %arg5[%c0_74, %c0_75] : memref<32x512xf32, #tpu.memory_space<vmem>>, vector<32x512xf32>
    %cst_76 = arith.constant dense<0.000000e+00> : vector<2x512xf32>
    %76 = tpu.matmul %74, %75, %cst_76 {dimension_numbers = #tpu.dot_dimension_numbers<[1], [0], [0], [1], [0, 0, 1, 1], [], []>} : vector<2x32xf32>, vector<32x512xf32>, vector<2x512xf32> -> vector<2x512xf32>
    %77 = vector.broadcast %4 : vector<1x512xf32> to vector<2x512xf32>
    %78 = arith.addf %76, %77 : vector<2x512xf32>
    %79 = vector.extract_strided_slice %78 {offsets = [0, 0], sizes = [2, 128], strides = [1, 1]} : vector<2x512xf32> to vector<2x128xf32>
    %80 = arith.negf %79 : vector<2x128xf32>
    %81 = math.exp %80 : vector<2x128xf32>
    %cst_77 = arith.constant 1.000000e+00 : f32
    %82 = vector.broadcast %cst_77 : f32 to vector<2x128xf32>
    %83 = arith.addf %82, %81 : vector<2x128xf32>
    %84 = arith.divf %82, %83 : vector<2x128xf32>
    %85 = vector.extract_strided_slice %78 {offsets = [0, 256], sizes = [2, 128], strides = [1, 1]} : vector<2x512xf32> to vector<2x128xf32>
    %86 = math.tanh %85 : vector<2x128xf32>
    %87 = vector.extract_strided_slice %78 {offsets = [0, 384], sizes = [2, 128], strides = [1, 1]} : vector<2x512xf32> to vector<2x128xf32>
    %88 = arith.negf %87 : vector<2x128xf32>
    %89 = math.exp %88 : vector<2x128xf32>
    %cst_78 = arith.constant 1.000000e+00 : f32
    %90 = vector.broadcast %cst_78 : f32 to vector<2x128xf32>
    %91 = arith.addf %90, %89 : vector<2x128xf32>
    %92 = arith.divf %90, %91 : vector<2x128xf32>
    %93 = arith.mulf %84, %86 : vector<2x128xf32>
    %94 = math.tanh %93 : vector<2x128xf32>
    %95 = arith.mulf %92, %94 : vector<2x128xf32>
    %c0_79 = arith.constant 0 : index
    %c0_80 = arith.constant 0 : index
    %96 = vector.load %arg6[%c0_79, %c0_80] : memref<128x8xf32, #tpu.memory_space<vmem>>, vector<128x8xf32>
    %cst_81 = arith.constant dense<0.000000e+00> : vector<2x8xf32>
    %97 = tpu.matmul %95, %96, %cst_81 {dimension_numbers = #tpu.dot_dimension_numbers<[1], [0], [0], [1], [0, 0, 1, 1], [], []>} : vector<2x128xf32>, vector<128x8xf32>, vector<2x8xf32> -> vector<2x8xf32>
    %98 = vector.broadcast %5 : vector<1x8xf32> to vector<2x8xf32>
    %99 = arith.addf %97, %98 : vector<2x8xf32>
    %c0_82 = arith.constant 0 : index
    %c0_83 = arith.constant 0 : index
    %100 = vector.load %arg8[%c0_82, %c0_83] : memref<2x8xf32, #tpu.memory_space<vmem>>, vector<2x8xf32>
    tpu.vector_store %arg8[%c0_82, %c0_83], %99 {strides = array<i32>} : memref<2x8xf32, #tpu.memory_space<vmem>>, vector<2x8xf32>,
    return
  }
}

</mosaic_0001>

<llo_original>
// kernel: tpu_custom_call.1
$region0: #{tpu_custom_call.1}
  #allocation0 [shape = 'u32[]', space=smem, size = 0x4, offset = 0x4, fixed_abs, tag = 'smem constant byte address 0x4 - core index']
  #allocation1 [shape = 'u32[144,128]{1,0:T(1,128)}', space=vmem, size = 0x12000, scoped, tag = 'internal scratch']
  #allocation2 [shape = 'f32[2,72,1]{2,1,0:T(8,128)}', space=vmem, size = 0x12000, scoped, tag = 'scratch operand']
  #allocation3 [shape = 'f32[2,40,16]{2,1,0:T(8,128)}', space=vmem, size = 0xa000, scoped, tag = 'scratch operand']
  #allocation4 [shape = 'f32[2,24,32]{2,1,0:T(8,128)}', space=vmem, size = 0x6000, scoped, tag = 'scratch operand']
  %s0 = inlined_call_operand.vmem [shape: f32[2,64,1], index: 0, kind: input, shape index: {}]
  %s1 = inlined_call_operand.vmem [shape: f32[3,1,16], index: 1, kind: input, shape index: {}]
  %s2 = inlined_call_operand.vmem [shape: f32[48,32], index: 2, kind: input, shape index: {}]
  %s3 = inlined_call_operand.vmem [shape: f32[96,64], index: 3, kind: input, shape index: {}]
  %s4 = inlined_call_operand.vmem [shape: f32[64,32], index: 4, kind: input, shape index: {}]
  %s5 = inlined_call_operand.vmem [shape: f32[32,512], index: 5, kind: input, shape index: {}]
  %s6 = inlined_call_operand.vmem [shape: f32[128,8], index: 6, kind: input, shape index: {}]
  %s7 = inlined_call_operand.vmem [shape: f32[1,1152], index: 7, kind: input, shape index: {}]
  %s8 = inlined_call_operand.hbm [shape: f32[2,8], index: 8, kind: output, shape index: {}]
  %s9 = sld [smem:[#allocation0]]
  $region42: #{tpu_custom_call.1} parent=0
    _
  %s11 = ssub.s32 1, %s9
  %s12 = scalar_select 0, %s11, %s9
  $region1: #{tpu_custom_call.1} parent=0
    #allocation5 [shape = 'u8[1024]{0}', space=vmem, size = 0x400, scoped, tag = 'output window, operand 0, single buffered']
    #allocation6 [shape = 's32[1]{0}', space=sflag, size = 0x4, scoped, tag = 'scoped memory for tpu_custom_call.1']
    %13 = vsyncpa [#allocation6], 0
    // Predicated region
    $region2: #{tpu_custom_call.1} parent=1 // pred_check
      _
    $region3: #{tpu_custom_call.1} parent=1 // pred_check_branch
      %15 = sbr.rel (0) target = $region5
    $region4: #{tpu_custom_call.1} parent=1 // pred_region
      _
    $region5: #{tpu_custom_call.1} parent=1 // pred_fallthru
      _
    // Predicated region
    $region6: #{tpu_custom_call.1} parent=1 // pred_check
      _
    $region7: #{tpu_custom_call.1} parent=1 // pred_check_branch
      %17 = sbr.rel (0) target = $region9
    $region8: #{tpu_custom_call.1} parent=1 // pred_region
      _
    $region9: #{tpu_custom_call.1} parent=1 // pred_fallthru
      _
    // Predicated region
    $region10: #{tpu_custom_call.1} parent=1 // pred_check
      _
    $region11: #{tpu_custom_call.1} parent=1 // pred_check_branch
      %19 = sbr.rel (0) target = $region13
    $region12: #{tpu_custom_call.1} parent=1 // pred_region
      _
    $region13: #{tpu_custom_call.1} parent=1 // pred_fallthru
      _
    // Predicated region
    $region14: #{tpu_custom_call.1} parent=1 // pred_check
      _
    $region15: #{tpu_custom_call.1} parent=1 // pred_check_branch
      %21 = sbr.rel (0) target = $region17
    $region16: #{tpu_custom_call.1} parent=1 // pred_region
      _
    $region17: #{tpu_custom_call.1} parent=1 // pred_fallthru
      _
    // Predicated region
    $region18: #{tpu_custom_call.1} parent=1 // pred_check
      _
    $region19: #{tpu_custom_call.1} parent=1 // pred_check_branch
      %23 = sbr.rel (0) target = $region21
    $region20: #{tpu_custom_call.1} parent=1 // pred_region
      _
    $region21: #{tpu_custom_call.1} parent=1 // pred_fallthru
      _
    // Predicated region
    $region22: #{tpu_custom_call.1} parent=1 // pred_check
      _
    $region23: #{tpu_custom_call.1} parent=1 // pred_check_branch
      %25 = sbr.rel (0) target = $region25
    $region24: #{tpu_custom_call.1} parent=1 // pred_region
      _
    $region25: #{tpu_custom_call.1} parent=1 // pred_fallthru
      _
    // Predicated region
    $region26: #{tpu_custom_call.1} parent=1 // pred_check
      _
    $region27: #{tpu_custom_call.1} parent=1 // pred_check_branch
      %27 = sbr.rel (0) target = $region29
    $region28: #{tpu_custom_call.1} parent=1 // pred_region
      _
    $region29: #{tpu_custom_call.1} parent=1 // pred_fallthru
      _
    // Predicated region
    $region30: #{tpu_custom_call.1} parent=1 // pred_check
      _
    $region31: #{tpu_custom_call.1} parent=1 // pred_check_branch
      %29 = sbr.rel (0) target = $region33
    $region32: #{tpu_custom_call.1} parent=1 // pred_region
      _
    $region33: #{tpu_custom_call.1} parent=1 // pred_fallthru
      _
    %v30 = vld [vmem:[%s7] sm:$0x1]
    %v31 = vld [vmem:[%s7 + $0x1] sm:$0x1]
    %v32 = vld [vmem:[%s7 + $0x2] sm:$0x1]
    %v33 = vld [vmem:[%s7 + $0x3] sm:$0x1]
    %v34 = vld [vmem:[%s7 + $0x4] sm:$0xf]
    %v35 = vld [vmem:[%s7 + $0x8] sm:$0x1]
    %vm36 = vcmask 7168
    %37 = vst.msk [vmem:[#allocation2] sm:$0xff] %vm36, 0.0
    %38 = vst.msk [vmem:[#allocation2 + $0x48] sm:$0xff] %vm36, 0.0
    %v39 = vld [vmem:[%s0] sm:$0xff]
    %v40 = vld [vmem:[%s0 + $0x8] sm:$0xff]
    %v41 = vld [vmem:[%s0 + $0x10] sm:$0xff]
    %v42 = vld [vmem:[%s0 + $0x18] sm:$0xff]
    %v43 = vld [vmem:[%s0 + $0x20] sm:$0xff]
    %v44 = vld [vmem:[%s0 + $0x28] sm:$0xff]
    %v45 = vld [vmem:[%s0 + $0x30] sm:$0xff]
    %v46 = vld [vmem:[%s0 + $0x38] sm:$0xff]
    %v47 = vld [vmem:[%s0 + $0x40] sm:$0xff]
    %v48 = vld [vmem:[%s0 + $0x48] sm:$0xff]
    %v49 = vld [vmem:[%s0 + $0x50] sm:$0xff]
    %v50 = vld [vmem:[%s0 + $0x58] sm:$0xff]
    %v51 = vld [vmem:[%s0 + $0x60] sm:$0xff]
    %v52 = vld [vmem:[%s0 + $0x68] sm:$0xff]
    %v53 = vld [vmem:[%s0 + $0x70] sm:$0xff]
    %v54 = vld [vmem:[%s0 + $0x78] sm:$0xff]
    %55 = vst.msk [vmem:[#allocation2 + $0x8] sm:$0xff] %vm36, %v39
    %56 = vst.msk [vmem:[#allocation2 + $0x10] sm:$0xff] %vm36, %v40
    %57 = vst.msk [vmem:[#allocation2 + $0x18] sm:$0xff] %vm36, %v41
    %58 = vst.msk [vmem:[#allocation2 + $0x20] sm:$0xff] %vm36, %v42
    %59 = vst.msk [vmem:[#allocation2 + $0x28] sm:$0xff] %vm36, %v43
    %60 = vst.msk [vmem:[#allocation2 + $0x30] sm:$0xff] %vm36, %v44
    %61 = vst.msk [vmem:[#allocation2 + $0x38] sm:$0xff] %vm36, %v45
    %62 = vst.msk [vmem:[#allocation2 + $0x40] sm:$0xff] %vm36, %v46
    %63 = vst.msk [vmem:[#allocation2 + $0x50] sm:$0xff] %vm36, %v47
    %64 = vst.msk [vmem:[#allocation2 + $0x58] sm:$0xff] %vm36, %v48
    %65 = vst.msk [vmem:[#allocation2 + $0x60] sm:$0xff] %vm36, %v49
    %66 = vst.msk [vmem:[#allocation2 + $0x68] sm:$0xff] %vm36, %v50
    %67 = vst.msk [vmem:[#allocation2 + $0x70] sm:$0xff] %vm36, %v51
    %68 = vst.msk [vmem:[#allocation2 + $0x78] sm:$0xff] %vm36, %v52
    %69 = vst.msk [vmem:[#allocation2 + $0x80] sm:$0xff] %vm36, %v53
    %70 = vst.msk [vmem:[#allocation2 + $0x88] sm:$0xff] %vm36, %v54
    %s71 = scalar_lea.vmem [#allocation2], 7
    %v72 = vld [vmem:[%s71] ss:$2 sm:$0xff]
    %s73 = scalar_lea.vmem [#allocation2], 23
    %v74 = vld [vmem:[%s73] ss:$2 sm:$0xff]
    %s75 = scalar_lea.vmem [#allocation2], 39
    %v76 = vld [vmem:[%s75] ss:$2 sm:$0xff]
    %s77 = scalar_lea.vmem [#allocation2], 55
    %v78 = vld [vmem:[%s77] ss:$2 sm:$0xff]
    %s79 = scalar_lea.vmem [#allocation2], 79
    %v80 = vld [vmem:[%s79] ss:$2 sm:$0xff]
    %s81 = scalar_lea.vmem [#allocation2], 95
    %v82 = vld [vmem:[%s81] ss:$2 sm:$0xff]
    %s83 = scalar_lea.vmem [#allocation2], 111
    %v84 = vld [vmem:[%s83] ss:$2 sm:$0xff]
    %s85 = scalar_lea.vmem [#allocation2], 127
    %v86 = vld [vmem:[%s85] ss:$2 sm:$0xff]
    %v87 = vld [vmem:[%s1] sm:$0x1]
    %89 = vset.pattern.permute.xlu0 0
    %90 = vperm.xlu0 %89, %v72
    %v91 = vpop.permute.xlu0 %90
    %94 = vset.pattern.permute.xlu0 0
    %95 = vperm.xlu0 %94, %v74
    %v96 = vpop.permute.xlu0 %95
    %99 = vset.pattern.permute.xlu0 0
    %100 = vperm.xlu0 %99, %v76
    %v101 = vpop.permute.xlu0 %100
    %104 = vset.pattern.permute.xlu0 0
    %105 = vperm.xlu0 %104, %v78
    %v106 = vpop.permute.xlu0 %105
    %109 = vset.pattern.permute.xlu0 0
    %110 = vperm.xlu0 %109, %v80
    %v111 = vpop.permute.xlu0 %110
    %114 = vset.pattern.permute.xlu0 0
    %115 = vperm.xlu0 %114, %v82
    %v116 = vpop.permute.xlu0 %115
    %119 = vset.pattern.permute.xlu0 0
    %120 = vperm.xlu0 %119, %v84
    %v121 = vpop.permute.xlu0 %120
    %124 = vset.pattern.permute.xlu0 0
    %125 = vperm.xlu0 %124, %v86
    %v126 = vpop.permute.xlu0 %125
    %v129 = vlaneseq
    %v130 = vshrl.u32 %v129, 7
    %v131 = vsub.s32 0, %v130
    %v132 = vrot.slane %v87, %v131
    %v134 = vmul.f32 %v91, %v132
    %v135 = vmul.f32 %v96, %v132
    %v136 = vmul.f32 %v101, %v132
    %v137 = vmul.f32 %v106, %v132
    %v138 = vmul.f32 %v111, %v132
    %v139 = vmul.f32 %v116, %v132
    %v140 = vmul.f32 %v121, %v132
    %v141 = vmul.f32 %v126, %v132
    %s142 = scalar_lea.vmem [#allocation2], 8
    %v143 = vld [vmem:[%s142] ss:$2 sm:$0xff]
    %s144 = scalar_lea.vmem [#allocation2], 24
    %v145 = vld [vmem:[%s144] ss:$2 sm:$0xff]
    %s146 = scalar_lea.vmem [#allocation2], 40
    %v147 = vld [vmem:[%s146] ss:$2 sm:$0xff]
    %s148 = scalar_lea.vmem [#allocation2], 56
    %v149 = vld [vmem:[%s148] ss:$2 sm:$0xff]
    %s150 = scalar_lea.vmem [#allocation2], 80
    %v151 = vld [vmem:[%s150] ss:$2 sm:$0xff]
    %s152 = scalar_lea.vmem [#allocation2], 96
    %v153 = vld [vmem:[%s152] ss:$2 sm:$0xff]
    %s154 = scalar_lea.vmem [#allocation2], 112
    %v155 = vld [vmem:[%s154] ss:$2 sm:$0xff]
    %s156 = scalar_lea.vmem [#allocation2], 128
    %v157 = vld [vmem:[%s156] ss:$2 sm:$0xff]
    %s158 = scalar_lea.vmem %s1, 1
    %v159 = vld [vmem:[%s158] sm:$0x1]
    %161 = vset.pattern.permute.xlu0 0
    %162 = vperm.xlu0 %161, %v143
    %v163 = vpop.permute.xlu0 %162
    %166 = vset.pattern.permute.xlu0 0
    %167 = vperm.xlu0 %166, %v145
    %v168 = vpop.permute.xlu0 %167
    %171 = vset.pattern.permute.xlu0 0
    %172 = vperm.xlu0 %171, %v147
    %v173 = vpop.permute.xlu0 %172
    %176 = vset.pattern.permute.xlu0 0
    %177 = vperm.xlu0 %176, %v149
    %v178 = vpop.permute.xlu0 %177
    %181 = vset.pattern.permute.xlu0 0
    %182 = vperm.xlu0 %181, %v151
    %v183 = vpop.permute.xlu0 %182
    %186 = vset.pattern.permute.xlu0 0
    %187 = vperm.xlu0 %186, %v153
    %v188 = vpop.permute.xlu0 %187
    %191 = vset.pattern.permute.xlu0 0
    %192 = vperm.xlu0 %191, %v155
    %v193 = vpop.permute.xlu0 %192
    %196 = vset.pattern.permute.xlu0 0
    %197 = vperm.xlu0 %196, %v157
    %v198 = vpop.permute.xlu0 %197
    %v201 = vlaneseq
    %v202 = vshrl.u32 %v201, 7
    %v203 = vsub.s32 0, %v202
    %v204 = vrot.slane %v159, %v203
    %v206 = vmul.f32 %v163, %v204
    %v207 = vmul.f32 %v168, %v204
    %v208 = vmul.f32 %v173, %v204
    %v209 = vmul.f32 %v178, %v204
    %v210 = vmul.f32 %v183, %v204
    %v211 = vmul.f32 %v188, %v204
    %v212 = vmul.f32 %v193, %v204
    %v213 = vmul.f32 %v198, %v204
    %v214 = vadd.f32 %v134, %v206
    %v215 = vadd.f32 %v135, %v207
    %v216 = vadd.f32 %v136, %v208
    %v217 = vadd.f32 %v137, %v209
    %v218 = vadd.f32 %v138, %v210
    %v219 = vadd.f32 %v139, %v211
    %v220 = vadd.f32 %v140, %v212
    %v221 = vadd.f32 %v141, %v213
    %s222 = scalar_lea.vmem [#allocation2], 9
    %v223 = vld [vmem:[%s222] ss:$2 sm:$0xff]
    %s224 = scalar_lea.vmem [#allocation2], 25
    %v225 = vld [vmem:[%s224] ss:$2 sm:$0xff]
    %s226 = scalar_lea.vmem [#allocation2], 41
    %v227 = vld [vmem:[%s226] ss:$2 sm:$0xff]
    %s228 = scalar_lea.vmem [#allocation2], 57
    %v229 = vld [vmem:[%s228] ss:$2 sm:$0xff]
    %s230 = scalar_lea.vmem [#allocation2], 81
    %v231 = vld [vmem:[%s230] ss:$2 sm:$0xff]
    %s232 = scalar_lea.vmem [#allocation2], 97
    %v233 = vld [vmem:[%s232] ss:$2 sm:$0xff]
    %s234 = scalar_lea.vmem [#allocation2], 113
    %v235 = vld [vmem:[%s234] ss:$2 sm:$0xff]
    %s236 = scalar_lea.vmem [#allocation2], 129
    %v237 = vld [vmem:[%s236] ss:$2 sm:$0xff]
    %s238 = scalar_lea.vmem %s1, 2
    %v239 = vld [vmem:[%s238] sm:$0x1]
    %241 = vset.pattern.permute.xlu0 0
    %242 = vperm.xlu0 %241, %v223
    %v243 = vpop.permute.xlu0 %242
    %246 = vset.pattern.permute.xlu0 0
    %247 = vperm.xlu0 %246, %v225
    %v248 = vpop.permute.xlu0 %247
    %251 = vset.pattern.permute.xlu0 0
    %252 = vperm.xlu0 %251, %v227
    %v253 = vpop.permute.xlu0 %252
    %256 = vset.pattern.permute.xlu0 0
    %257 = vperm.xlu0 %256, %v229
    %v258 = vpop.permute.xlu0 %257
    %261 = vset.pattern.permute.xlu0 0
    %262 = vperm.xlu0 %261, %v231
    %v263 = vpop.permute.xlu0 %262
    %266 = vset.pattern.permute.xlu0 0
    %267 = vperm.xlu0 %266, %v233
    %v268 = vpop.permute.xlu0 %267
    %271 = vset.pattern.permute.xlu0 0
    %272 = vperm.xlu0 %271, %v235
    %v273 = vpop.permute.xlu0 %272
    %276 = vset.pattern.permute.xlu0 0
    %277 = vperm.xlu0 %276, %v237
    %v278 = vpop.permute.xlu0 %277
    %v281 = vlaneseq
    %v282 = vshrl.u32 %v281, 7
    %v283 = vsub.s32 0, %v282
    %v284 = vrot.slane %v239, %v283
    %v286 = vmul.f32 %v243, %v284
    %v287 = vmul.f32 %v248, %v284
    %v288 = vmul.f32 %v253, %v284
    %v289 = vmul.f32 %v258, %v284
    %v290 = vmul.f32 %v263, %v284
    %v291 = vmul.f32 %v268, %v284
    %v292 = vmul.f32 %v273, %v284
    %v293 = vmul.f32 %v278, %v284
    %v294 = vadd.f32 %v214, %v286
    %v295 = vadd.f32 %v215, %v287
    %v296 = vadd.f32 %v216, %v288
    %v297 = vadd.f32 %v217, %v289
    %v298 = vadd.f32 %v218, %v290
    %v299 = vadd.f32 %v219, %v291
    %v300 = vadd.f32 %v220, %v292
    %v301 = vadd.f32 %v221, %v293
    %v303 = vlaneseq
    %v304 = vshrl.u32 %v303, 7
    %v305 = vsub.s32 0, %v304
    %v306 = vrot.slane %v30, %v305
    %v308 = vadd.f32 %v294, %v306
    %v309 = vadd.f32 %v295, %v306
    %v310 = vadd.f32 %v296, %v306
    %v311 = vadd.f32 %v297, %v306
    %v312 = vadd.f32 %v298, %v306
    %v313 = vadd.f32 %v299, %v306
    %v314 = vadd.f32 %v300, %v306
    %v315 = vadd.f32 %v301, %v306
    %v316 = vmax.f32 %v308, 0.0
    %v317 = vmax.f32 %v309, 0.0
    %v318 = vmax.f32 %v310, 0.0
    %v319 = vmax.f32 %v311, 0.0
    %v320 = vmax.f32 %v312, 0.0
    %v321 = vmax.f32 %v313, 0.0
    %v322 = vmax.f32 %v314, 0.0
    %v323 = vmax.f32 %v315, 0.0
    %vm324 = vcmask 130048
    %325 = vst.msk [vmem:[#allocation3] sm:$0xff] %vm324, 0.0
    %326 = vst.msk [vmem:[#allocation3 + $0x28] sm:$0xff] %vm324, 0.0
    %327 = vst.msk [vmem:[#allocation3 + $0x8] sm:$0xff] %vm324, %v316
    %328 = vst.msk [vmem:[#allocation3 + $0x10] sm:$0xff] %vm324, %v317
    %329 = vst.msk [vmem:[#allocation3 + $0x18] sm:$0xff] %vm324, %v318
    %330 = vst.msk [vmem:[#allocation3 + $0x20] sm:$0xff] %vm324, %v319
    %331 = vst.msk [vmem:[#allocation3 + $0x30] sm:$0xff] %vm324, %v320
    %332 = vst.msk [vmem:[#allocation3 + $0x38] sm:$0xff] %vm324, %v321
    %333 = vst.msk [vmem:[#allocation3 + $0x40] sm:$0xff] %vm324, %v322
    %334 = vst.msk [vmem:[#allocation3 + $0x48] sm:$0xff] %vm324, %v323
    %s335 = scalar_lea.vmem [#allocation3], 7
    %v336 = vld [vmem:[%s335] ss:$2 sm:$0xff]
    %s337 = scalar_lea.vmem [#allocation3], 23
    %v338 = vld [vmem:[%s337] ss:$2 sm:$0xff]
    %s339 = scalar_lea.vmem [#allocation3], 47
    %v340 = vld [vmem:[%s339] ss:$2 sm:$0xff]
    %s341 = scalar_lea.vmem [#allocation3], 63
    %v342 = vld [vmem:[%s341] ss:$2 sm:$0xff]
    %s343 = scalar_lea.vmem [#allocation3], 8
    %v344 = vld [vmem:[%s343] ss:$2 sm:$0xff]
    %s345 = scalar_lea.vmem [#allocation3], 24
    %v346 = vld [vmem:[%s345] ss:$2 sm:$0xff]
    %s347 = scalar_lea.vmem [#allocation3], 48
    %v348 = vld [vmem:[%s347] ss:$2 sm:$0xff]
    %s349 = scalar_lea.vmem [#allocation3], 64
    %v350 = vld [vmem:[%s349] ss:$2 sm:$0xff]
    %s351 = scalar_lea.vmem [#allocation3], 9
    %v352 = vld [vmem:[%s351] ss:$2 sm:$0xff]
    %s353 = scalar_lea.vmem [#allocation3], 25
    %v354 = vld [vmem:[%s353] ss:$2 sm:$0xff]
    %s355 = scalar_lea.vmem [#allocation3], 49
    %v356 = vld [vmem:[%s355] ss:$2 sm:$0xff]
    %s357 = scalar_lea.vmem [#allocation3], 65
    %v358 = vld [vmem:[%s357] ss:$2 sm:$0xff]
    %363 = vrot.lane.b32.xlu0 %v344, 16
    %v364 = vpop.permute.xlu0 %363
    %365 = vrot.lane.b32.xlu0 %v346, 16
    %v366 = vpop.permute.xlu0 %365
    %367 = vrot.lane.b32.xlu0 %v348, 16
    %v368 = vpop.permute.xlu0 %367
    %369 = vrot.lane.b32.xlu0 %v350, 16
    %v370 = vpop.permute.xlu0 %369
    %379 = vrot.lane.b32.xlu0 %v352, 32
    %v380 = vpop.permute.xlu0 %379
    %381 = vrot.lane.b32.xlu0 %v354, 32
    %v382 = vpop.permute.xlu0 %381
    %383 = vrot.lane.b32.xlu0 %v356, 32
    %v384 = vpop.permute.xlu0 %383
    %385 = vrot.lane.b32.xlu0 %v358, 32
    %v386 = vpop.permute.xlu0 %385
    %v391 = vsel %vm324, %v336, %v364
    %v392 = vsel %vm324, %v338, %v366
    %v393 = vsel %vm324, %v340, %v368
    %v394 = vsel %vm324, %v342, %v370
    %vm395 = vcmask 261120
    %v396 = vsel %vm395, %v391, %v380
    %v397 = vsel %vm395, %v392, %v382
    %v398 = vsel %vm395, %v393, %v384
    %v399 = vsel %vm395, %v394, %v386
    %v400 = vld [vmem:[%s2] sm:$0xff]
    %v401 = vld [vmem:[%s2 + $0x8] sm:$0xff]
    %v402 = vld [vmem:[%s2 + $0x10] sm:$0xff]
    %v403 = vld [vmem:[%s2 + $0x18] sm:$0xff]
    %v404 = vld [vmem:[%s2 + $0x20] sm:$0xff]
    %v405 = vld [vmem:[%s2 + $0x28] sm:$0xff]
    %v407 = vlaneseq
    %v408 = vshrl.u32 %v407, 7
    %v409 = vsub.s32 0, %v408
    %v410 = vrot.slane %v31, %v409
    %vm412 = vcmask 392192
    %v414 = vsel %vm412, %v396, 0
    %v417 = vsel %vm412, %v397, 0
    %v420 = vsel %vm412, %v398, 0
    %v423 = vsel %vm412, %v399, 0
    %425 = vmatprep.subr.mxu0 0.0
    %426 = vmatpush1.msra.mxu0 0.0
    %427 = vmatprep.subr.mxu0 0.0
    %428 = vmatpush1.msra.mxu0 0.0
    %429 = vmatprep.subr.mxu0 0.0
    %430 = vmatpush1.msra.mxu0 0.0
    %431 = vmatprep.subr.mxu0 0.0
    %432 = vmatpush1.msra.mxu0 0.0
    %433 = vmatprep.subr.mxu0 0.0
    %434 = vmatpush1.msra.mxu0 0.0
    %435 = vmatprep.subr.mxu0 0.0
    %436 = vmatpush1.msra.mxu0 0.0
    %437 = vmatprep.subr.mxu0 0.0
    %438 = vmatpush1.msra.mxu0 0.0
    %439 = vmatprep.subr.mxu0 0.0
    %440 = vmatpush1.msra.mxu0 0.0
    %441 = vmatprep.subr.mxu0 0.0
    %442 = vmatpush1.msra.mxu0 0.0
    %443 = vmatprep.subr.mxu0 0.0
    %444 = vmatpush1.msra.mxu0 0.0
    %445 = vmatprep.subr.mxu0 0.0
    %446 = vmatpush1.msra.mxu0 %v405
    %447 = vmatprep.subr.mxu0 0.0
    %448 = vmatpush1.msra.mxu0 %v404
    %449 = vmatprep.subr.mxu0 0.0
    %450 = vmatpush1.msra.mxu0 %v403
    %451 = vmatprep.subr.mxu0 0.0
    %452 = vmatpush1.msra.mxu0 %v402
    %453 = vmatprep.subr.mxu0 0.0
    %454 = vmatpush1.msra.mxu0 %v401
    %455 = vmatprep.subr.mxu0 0.0
    %456 = vmatpush1.msra.mxu0 %v400
    %457 = vmatprep.subr.mxu0 0.0
    %458 = vmatpush2.msra.mxu0 0.0
    %459 = vmatprep.subr.mxu0 0.0
    %460 = vmatpush2.msra.mxu0 0.0
    %461 = vmatprep.subr.mxu0 0.0
    %462 = vmatpush2.msra.mxu0 0.0
    %463 = vmatprep.subr.mxu0 0.0
    %464 = vmatpush2.msra.mxu0 0.0
    %465 = vmatprep.subr.mxu0 0.0
    %466 = vmatpush2.msra.mxu0 0.0
    %467 = vmatprep.subr.mxu0 0.0
    %468 = vmatpush2.msra.mxu0 0.0
    %469 = vmatprep.subr.mxu0 0.0
    %470 = vmatpush2.msra.mxu0 0.0
    %471 = vmatprep.subr.mxu0 0.0
    %472 = vmatpush2.msra.mxu0 0.0
    %473 = vmatprep.subr.mxu0 0.0
    %474 = vmatpush2.msra.mxu0 0.0
    %475 = vmatprep.subr.mxu0 0.0
    %476 = vmatpush2.msra.mxu0 0.0
    %477 = vmatprep.subr.mxu0 0.0
    %478 = vmatpush2.msra.mxu0 0.0
    %479 = vmatprep.subr.mxu0 0.0
    %480 = vmatpush2.msra.mxu0 0.0
    %481 = vmatprep.subr.mxu0 0.0
    %482 = vmatpush2.msra.mxu0 0.0
    %483 = vmatprep.subr.mxu0 0.0
    %484 = vmatpush2.msra.mxu0 0.0
    %485 = vmatprep.subr.mxu0 0.0
    %486 = vmatpush2.msra.mxu0 0.0
    %487 = vmatprep.subr.mxu0 0.0
    %488 = vmatpush2.msra.mxu0 0.0
    %489 = vmatprep.mubr.f32.mxu0 0.0
    %490 = vmatmul.mubr.f32.gmra.mxu0 %v414
    %v491 = vpop.f32.mrf.mxu0
    %v492 = vadd.f32 %v410, %v491
    %v493 = vpop.f32.mrf.mxu0
    %494 = vmatprep.mubr.f32.mxu0 0.0
    %495 = vmatmul.mubr.f32.gmra.mxu0 %v417
    %v496 = vpop.f32.mrf.mxu0
    %v497 = vadd.f32 %v410, %v496
    %v498 = vpop.f32.mrf.mxu0
    %499 = vmatprep.mubr.f32.mxu0 0.0
    %500 = vmatmul.mubr.f32.gmra.mxu0 %v420
    %v501 = vpop.f32.mrf.mxu0
    %v502 = vadd.f32 %v410, %v501
    %v503 = vpop.f32.mrf.mxu0
    %504 = vmatprep.mubr.f32.mxu0 0.0
    %505 = vmatmul.mubr.f32.gmra.mxu0 %v423
    %v506 = vpop.f32.mrf.mxu0
    %v507 = vadd.f32 %v410, %v506
    %v508 = vpop.f32.mrf.mxu0
    %509 = vdwg.mxu0
    %v510 = vmax.f32 %v492, 0.0
    %v511 = vmax.f32 %v497, 0.0
    %v512 = vmax.f32 %v502, 0.0
    %v513 = vmax.f32 %v507, 0.0
    %514 = vst.msk [vmem:[#allocation4] sm:$0xff] %vm395, 0.0
    %515 = vst.msk [vmem:[#allocation4 + $0x18] sm:$0xff] %vm395, 0.0
    %516 = vst.msk [vmem:[#allocation4 + $0x8] sm:$0xff] %vm395, %v510
    %517 = vst.msk [vmem:[#allocation4 + $0x10] sm:$0xff] %vm395, %v511
    %518 = vst.msk [vmem:[#allocation4 + $0x20] sm:$0xff] %vm395, %v512
    %519 = vst.msk [vmem:[#allocation4 + $0x28] sm:$0xff] %vm395, %v513
    %s520 = scalar_lea.vmem [#allocation4], 7
    %v521 = vld [vmem:[%s520] ss:$2 sm:$0xff]
    %s522 = scalar_lea.vmem [#allocation4], 31
    %v523 = vld [vmem:[%s522] ss:$2 sm:$0xff]
    %s524 = scalar_lea.vmem [#allocation4], 8
    %v525 = vld [vmem:[%s524] ss:$2 sm:$0xff]
    %s526 = scalar_lea.vmem [#allocation4], 32
    %v527 = vld [vmem:[%s526] ss:$2 sm:$0xff]
    %s528 = scalar_lea.vmem [#allocation4], 9
    %v529 = vld [vmem:[%s528] ss:$2 sm:$0xff]
    %s530 = scalar_lea.vmem [#allocation4], 33
    %v531 = vld [vmem:[%s530] ss:$2 sm:$0xff]
    %534 = vrot.lane.b32.xlu0 %v525, 32
    %v535 = vpop.permute.xlu0 %534
    %536 = vrot.lane.b32.xlu0 %v527, 32
    %v537 = vpop.permute.xlu0 %536
    %542 = vrot.lane.b32.xlu0 %v529, 64
    %v543 = vpop.permute.xlu0 %542
    %544 = vrot.lane.b32.xlu0 %v531, 64
    %v545 = vpop.permute.xlu0 %544
    %v548 = vsel %vm395, %v521, %v535
    %v549 = vsel %vm395, %v523, %v537
    %vm550 = vcmask 523264
    %v551 = vsel %vm550, %v548, %v543
    %v552 = vsel %vm550, %v549, %v545
    %v553 = vld [vmem:[%s3] sm:$0xff]
    %v554 = vld [vmem:[%s3 + $0x8] sm:$0xff]
    %v555 = vld [vmem:[%s3 + $0x10] sm:$0xff]
    %v556 = vld [vmem:[%s3 + $0x18] sm:$0xff]
    %v557 = vld [vmem:[%s3 + $0x20] sm:$0xff]
    %v558 = vld [vmem:[%s3 + $0x28] sm:$0xff]
    %v559 = vld [vmem:[%s3 + $0x30] sm:$0xff]
    %v560 = vld [vmem:[%s3 + $0x38] sm:$0xff]
    %v561 = vld [vmem:[%s3 + $0x40] sm:$0xff]
    %v562 = vld [vmem:[%s3 + $0x48] sm:$0xff]
    %v563 = vld [vmem:[%s3 + $0x50] sm:$0xff]
    %v564 = vld [vmem:[%s3 + $0x58] sm:$0xff]
    %v566 = vlaneseq
    %v567 = vshrl.u32 %v566, 7
    %v568 = vsub.s32 0, %v567
    %v569 = vrot.slane %v32, %v568
    %vm571 = vcmask 785408
    %v573 = vsel %vm571, %v551, 0
    %v576 = vsel %vm571, %v552, 0
    %578 = vmatprep.subr.mxu0 0.0
    %579 = vmatpush1.msra.mxu0 0.0
    %580 = vmatprep.subr.mxu0 0.0
    %581 = vmatpush1.msra.mxu0 0.0
    %582 = vmatprep.subr.mxu0 0.0
    %583 = vmatpush1.msra.mxu0 0.0
    %584 = vmatprep.subr.mxu0 0.0
    %585 = vmatpush1.msra.mxu0 0.0
    %586 = vmatprep.subr.mxu0 0.0
    %587 = vmatpush1.msra.mxu0 %v564
    %588 = vmatprep.subr.mxu0 0.0
    %589 = vmatpush1.msra.mxu0 %v563
    %590 = vmatprep.subr.mxu0 0.0
    %591 = vmatpush1.msra.mxu0 %v562
    %592 = vmatprep.subr.mxu0 0.0
    %593 = vmatpush1.msra.mxu0 %v561
    %594 = vmatprep.subr.mxu0 0.0
    %595 = vmatpush1.msra.mxu0 %v560
    %596 = vmatprep.subr.mxu0 0.0
    %597 = vmatpush1.msra.mxu0 %v559
    %598 = vmatprep.subr.mxu0 0.0
    %599 = vmatpush1.msra.mxu0 %v558
    %600 = vmatprep.subr.mxu0 0.0
    %601 = vmatpush1.msra.mxu0 %v557
    %602 = vmatprep.subr.mxu0 0.0
    %603 = vmatpush1.msra.mxu0 %v556
    %604 = vmatprep.subr.mxu0 0.0
    %605 = vmatpush1.msra.mxu0 %v555
    %606 = vmatprep.subr.mxu0 0.0
    %607 = vmatpush1.msra.mxu0 %v554
    %608 = vmatprep.subr.mxu0 0.0
    %609 = vmatpush1.msra.mxu0 %v553
    %610 = vmatprep.subr.mxu0 0.0
    %611 = vmatpush2.msra.mxu0 0.0
    %612 = vmatprep.subr.mxu0 0.0
    %613 = vmatpush2.msra.mxu0 0.0
    %614 = vmatprep.subr.mxu0 0.0
    %615 = vmatpush2.msra.mxu0 0.0
    %616 = vmatprep.subr.mxu0 0.0
    %617 = vmatpush2.msra.mxu0 0.0
    %618 = vmatprep.subr.mxu0 0.0
    %619 = vmatpush2.msra.mxu0 0.0
    %620 = vmatprep.subr.mxu0 0.0
    %621 = vmatpush2.msra.mxu0 0.0
    %622 = vmatprep.subr.mxu0 0.0
    %623 = vmatpush2.msra.mxu0 0.0
    %624 = vmatprep.subr.mxu0 0.0
    %625 = vmatpush2.msra.mxu0 0.0
    %626 = vmatprep.subr.mxu0 0.0
    %627 = vmatpush2.msra.mxu0 0.0
    %628 = vmatprep.subr.mxu0 0.0
    %629 = vmatpush2.msra.mxu0 0.0
    %630 = vmatprep.subr.mxu0 0.0
    %631 = vmatpush2.msra.mxu0 0.0
    %632 = vmatprep.subr.mxu0 0.0
    %633 = vmatpush2.msra.mxu0 0.0
    %634 = vmatprep.subr.mxu0 0.0
    %635 = vmatpush2.msra.mxu0 0.0
    %636 = vmatprep.subr.mxu0 0.0
    %637 = vmatpush2.msra.mxu0 0.0
    %638 = vmatprep.subr.mxu0 0.0
    %639 = vmatpush2.msra.mxu0 0.0
    %640 = vmatprep.subr.mxu0 0.0
    %641 = vmatpush2.msra.mxu0 0.0
    %642 = vmatprep.mubr.f32.mxu0 0.0
    %643 = vmatmul.mubr.f32.gmra.mxu0 %v573
    %v644 = vpop.f32.mrf.mxu0
    %v645 = vadd.f32 %v569, %v644
    %v646 = vpop.f32.mrf.mxu0
    %647 = vmatprep.mubr.f32.mxu0 0.0
    %648 = vmatmul.mubr.f32.gmra.mxu0 %v576
    %v649 = vpop.f32.mrf.mxu0
    %v650 = vadd.f32 %v569, %v649
    %v651 = vpop.f32.mrf.mxu0
    %652 = vdwg.mxu0
    %v653 = vmax.f32 %v645, 0.0
    %v654 = vmax.f32 %v650, 0.0
    %v655 = vsel %vm550, %v653, 0.0
    %v656 = vrot.slane %v655, 4
    %v657 = vadd.f32 %v655, %v656
    %v658 = vrot.slane %v657, 2
    %v659 = vadd.f32 %v657, %v658
    %v660 = vrot.slane %v659, 1
    %v661 = vadd.f32 %v659, %v660
    %v662 = vsel %vm550, %v654, 0.0
    %v663 = vrot.slane %v662, 4
    %v664 = vadd.f32 %v662, %v663
    %v665 = vrot.slane %v664, 2
    %v666 = vadd.f32 %v664, %v665
    %v667 = vrot.slane %v666, 1
    %v668 = vadd.f32 %v666, %v667
    %v669 = vrcp.pop 8.0
    %v670 = vmul.f32 %v661, %v669
    %v671 = vmul.f32 %v668, %v669
    %v672 = vld [vmem:[%s4] sm:$0xff]
    %v673 = vld [vmem:[%s4 + $0x8] sm:$0xff]
    %v674 = vld [vmem:[%s4 + $0x10] sm:$0xff]
    %v675 = vld [vmem:[%s4 + $0x18] sm:$0xff]
    %v676 = vld [vmem:[%s4 + $0x20] sm:$0xff]
    %v677 = vld [vmem:[%s4 + $0x28] sm:$0xff]
    %v678 = vld [vmem:[%s4 + $0x30] sm:$0xff]
    %v679 = vld [vmem:[%s4 + $0x38] sm:$0xff]
    %v681 = vlaneseq
    %v682 = vshrl.u32 %v681, 7
    %v683 = vsub.s32 0, %v682
    %v684 = vrot.slane %v33, %v683
    %vm688 = vcmask 1041409
    %v689 = vsel %vm688, %v671, %v670
    %v690 = vsel %vm550, %v689, 0
    %692 = vmatprep.subr.mxu0 0.0
    %693 = vmatpush1.msra.mxu0 0.0
    %694 = vmatprep.subr.mxu0 0.0
    %695 = vmatpush1.msra.mxu0 0.0
    %696 = vmatprep.subr.mxu0 0.0
    %697 = vmatpush1.msra.mxu0 0.0
    %698 = vmatprep.subr.mxu0 0.0
    %699 = vmatpush1.msra.mxu0 0.0
    %700 = vmatprep.subr.mxu0 0.0
    %701 = vmatpush1.msra.mxu0 0.0
    %702 = vmatprep.subr.mxu0 0.0
    %703 = vmatpush1.msra.mxu0 0.0
    %704 = vmatprep.subr.mxu0 0.0
    %705 = vmatpush1.msra.mxu0 0.0
    %706 = vmatprep.subr.mxu0 0.0
    %707 = vmatpush1.msra.mxu0 0.0
    %708 = vmatprep.subr.mxu0 0.0
    %709 = vmatpush1.msra.mxu0 %v679
    %710 = vmatprep.subr.mxu0 0.0
    %711 = vmatpush1.msra.mxu0 %v678
    %712 = vmatprep.subr.mxu0 0.0
    %713 = vmatpush1.msra.mxu0 %v677
    %714 = vmatprep.subr.mxu0 0.0
    %715 = vmatpush1.msra.mxu0 %v676
    %716 = vmatprep.subr.mxu0 0.0
    %717 = vmatpush1.msra.mxu0 %v675
    %718 = vmatprep.subr.mxu0 0.0
    %719 = vmatpush1.msra.mxu0 %v674
    %720 = vmatprep.subr.mxu0 0.0
    %721 = vmatpush1.msra.mxu0 %v673
    %722 = vmatprep.subr.mxu0 0.0
    %723 = vmatpush1.msra.mxu0 %v672
    %724 = vmatprep.subr.mxu0 0.0
    %725 = vmatpush2.msra.mxu0 0.0
    %726 = vmatprep.subr.mxu0 0.0
    %727 = vmatpush2.msra.mxu0 0.0
    %728 = vmatprep.subr.mxu0 0.0
    %729 = vmatpush2.msra.mxu0 0.0
    %730 = vmatprep.subr.mxu0 0.0
    %731 = vmatpush2.msra.mxu0 0.0
    %732 = vmatprep.subr.mxu0 0.0
    %733 = vmatpush2.msra.mxu0 0.0
    %734 = vmatprep.subr.mxu0 0.0
    %735 = vmatpush2.msra.mxu0 0.0
    %736 = vmatprep.subr.mxu0 0.0
    %737 = vmatpush2.msra.mxu0 0.0
    %738 = vmatprep.subr.mxu0 0.0
    %739 = vmatpush2.msra.mxu0 0.0
    %740 = vmatprep.subr.mxu0 0.0
    %741 = vmatpush2.msra.mxu0 0.0
    %742 = vmatprep.subr.mxu0 0.0
    %743 = vmatpush2.msra.mxu0 0.0
    %744 = vmatprep.subr.mxu0 0.0
    %745 = vmatpush2.msra.mxu0 0.0
    %746 = vmatprep.subr.mxu0 0.0
    %747 = vmatpush2.msra.mxu0 0.0
    %748 = vmatprep.subr.mxu0 0.0
    %749 = vmatpush2.msra.mxu0 0.0
    %750 = vmatprep.subr.mxu0 0.0
    %751 = vmatpush2.msra.mxu0 0.0
    %752 = vmatprep.subr.mxu0 0.0
    %753 = vmatpush2.msra.mxu0 0.0
    %754 = vmatprep.subr.mxu0 0.0
    %755 = vmatpush2.msra.mxu0 0.0
    %756 = vmatprep.mubr.f32.mxu0 0.0
    %757 = vmatmul.mubr.f32.gmra.mxu0 %v690
    %v758 = vpop.f32.mrf.mxu0
    %v759 = vadd.f32 %v684, %v758
    %v760 = vpop.f32.mrf.mxu0
    %761 = vdwg.mxu0
    %v762 = vld [vmem:[%s5] sm:$0xff]
    %v763 = vld [vmem:[%s5 + $0x8] sm:$0xff]
    %v764 = vld [vmem:[%s5 + $0x10] sm:$0xff]
    %v765 = vld [vmem:[%s5 + $0x18] sm:$0xff]
    %v766 = vld [vmem:[%s5 + $0x20] sm:$0xff]
    %v767 = vld [vmem:[%s5 + $0x28] sm:$0xff]
    %v768 = vld [vmem:[%s5 + $0x30] sm:$0xff]
    %v769 = vld [vmem:[%s5 + $0x38] sm:$0xff]
    %v770 = vld [vmem:[%s5 + $0x40] sm:$0xff]
    %v771 = vld [vmem:[%s5 + $0x48] sm:$0xff]
    %v772 = vld [vmem:[%s5 + $0x50] sm:$0xff]
    %v773 = vld [vmem:[%s5 + $0x58] sm:$0xff]
    %v774 = vld [vmem:[%s5 + $0x60] sm:$0xff]
    %v775 = vld [vmem:[%s5 + $0x68] sm:$0xff]
    %v776 = vld [vmem:[%s5 + $0x70] sm:$0xff]
    %v777 = vld [vmem:[%s5 + $0x78] sm:$0xff]
    %v779 = vlaneseq
    %v780 = vshrl.u32 %v779, 7
    %v781 = vsub.s32 0, %v780
    %v782 = vrot.slane %v34, %v781
    %v783 = vlaneseq
    %v784 = vshrl.u32 %v783, 7
    %v785 = vsub.s32 2, %v784
    %v786 = vrot.slane %v34, %v785
    %v787 = vlaneseq
    %v788 = vshrl.u32 %v787, 7
    %v789 = vsub.s32 3, %v788
    %v790 = vrot.slane %v34, %v789
    %v795 = vsel %vm395, %v759, 0
    %797 = vmatprep.subr.mxu0 0.0
    %798 = vmatpush1.msra.mxu0 0.0
    %799 = vmatprep.subr.mxu0 0.0
    %800 = vmatpush1.msra.mxu0 0.0
    %801 = vmatprep.subr.mxu0 0.0
    %802 = vmatpush1.msra.mxu0 0.0
    %803 = vmatprep.subr.mxu0 0.0
    %804 = vmatpush1.msra.mxu0 0.0
    %805 = vmatprep.subr.mxu0 0.0
    %806 = vmatpush1.msra.mxu0 0.0
    %807 = vmatprep.subr.mxu0 0.0
    %808 = vmatpush1.msra.mxu0 0.0
    %809 = vmatprep.subr.mxu0 0.0
    %810 = vmatpush1.msra.mxu0 0.0
    %811 = vmatprep.subr.mxu0 0.0
    %812 = vmatpush1.msra.mxu0 0.0
    %813 = vmatprep.subr.mxu0 0.0
    %814 = vmatpush1.msra.mxu0 0.0
    %815 = vmatprep.subr.mxu0 0.0
    %816 = vmatpush1.msra.mxu0 0.0
    %817 = vmatprep.subr.mxu0 0.0
    %818 = vmatpush1.msra.mxu0 0.0
    %819 = vmatprep.subr.mxu0 0.0
    %820 = vmatpush1.msra.mxu0 0.0
    %821 = vmatprep.subr.mxu0 %v775
    %822 = vmatpush1.msra.mxu0 %v774
    %823 = vmatprep.subr.mxu0 %v771
    %824 = vmatpush1.msra.mxu0 %v770
    %825 = vmatprep.subr.mxu0 %v767
    %826 = vmatpush1.msra.mxu0 %v766
    %827 = vmatprep.subr.mxu0 %v763
    %828 = vmatpush1.msra.mxu0 %v762
    %829 = vmatprep.subr.mxu0 0.0
    %830 = vmatpush2.msra.mxu0 0.0
    %831 = vmatprep.subr.mxu0 0.0
    %832 = vmatpush2.msra.mxu0 0.0
    %833 = vmatprep.subr.mxu0 0.0
    %834 = vmatpush2.msra.mxu0 0.0
    %835 = vmatprep.subr.mxu0 0.0
    %836 = vmatpush2.msra.mxu0 0.0
    %837 = vmatprep.subr.mxu0 0.0
    %838 = vmatpush2.msra.mxu0 0.0
    %839 = vmatprep.subr.mxu0 0.0
    %840 = vmatpush2.msra.mxu0 0.0
    %841 = vmatprep.subr.mxu0 0.0
    %842 = vmatpush2.msra.mxu0 0.0
    %843 = vmatprep.subr.mxu0 0.0
    %844 = vmatpush2.msra.mxu0 0.0
    %845 = vmatprep.subr.mxu0 0.0
    %846 = vmatpush2.msra.mxu0 0.0
    %847 = vmatprep.subr.mxu0 0.0
    %848 = vmatpush2.msra.mxu0 0.0
    %849 = vmatprep.subr.mxu0 0.0
    %850 = vmatpush2.msra.mxu0 0.0
    %851 = vmatprep.subr.mxu0 0.0
    %852 = vmatpush2.msra.mxu0 0.0
    %853 = vmatprep.subr.mxu0 0.0
    %854 = vmatpush2.msra.mxu0 0.0
    %855 = vmatprep.subr.mxu0 0.0
    %856 = vmatpush2.msra.mxu0 0.0
    %857 = vmatprep.subr.mxu0 0.0
    %858 = vmatpush2.msra.mxu0 0.0
    %859 = vmatprep.subr.mxu0 0.0
    %860 = vmatpush2.msra.mxu0 0.0
    %861 = vmatprep.mubr.f32.mxu0 0.0
    %862 = vmatmul.mubr.f32.gmra.mxu0 %v795
    %v863 = vpop.f32.mrf.mxu0
    %v864 = vadd.f32 %v782, %v863
    %v865 = vpop.f32.mrf.mxu0
    %866 = vdwg.mxu0
    %867 = vmatprep.subr.mxu0 0.0
    %868 = vmatpush1.msra.mxu0 0.0
    %869 = vmatprep.subr.mxu0 0.0
    %870 = vmatpush1.msra.mxu0 0.0
    %871 = vmatprep.subr.mxu0 0.0
    %872 = vmatpush1.msra.mxu0 0.0
    %873 = vmatprep.subr.mxu0 0.0
    %874 = vmatpush1.msra.mxu0 0.0
    %875 = vmatprep.subr.mxu0 0.0
    %876 = vmatpush1.msra.mxu0 0.0
    %877 = vmatprep.subr.mxu0 0.0
    %878 = vmatpush1.msra.mxu0 0.0
    %879 = vmatprep.subr.mxu0 0.0
    %880 = vmatpush1.msra.mxu0 0.0
    %881 = vmatprep.subr.mxu0 0.0
    %882 = vmatpush1.msra.mxu0 0.0
    %883 = vmatprep.subr.mxu0 0.0
    %884 = vmatpush1.msra.mxu0 0.0
    %885 = vmatprep.subr.mxu0 0.0
    %886 = vmatpush1.msra.mxu0 0.0
    %887 = vmatprep.subr.mxu0 0.0
    %888 = vmatpush1.msra.mxu0 0.0
    %889 = vmatprep.subr.mxu0 0.0
    %890 = vmatpush1.msra.mxu0 0.0
    %891 = vmatprep.subr.mxu0 %v777
    %892 = vmatpush1.msra.mxu0 %v776
    %893 = vmatprep.subr.mxu0 %v773
    %894 = vmatpush1.msra.mxu0 %v772
    %895 = vmatprep.subr.mxu0 %v769
    %896 = vmatpush1.msra.mxu0 %v768
    %897 = vmatprep.subr.mxu0 %v765
    %898 = vmatpush1.msra.mxu0 %v764
    %899 = vmatprep.subr.mxu0 0.0
    %900 = vmatpush2.msra.mxu0 0.0
    %901 = vmatprep.subr.mxu0 0.0
    %902 = vmatpush2.msra.mxu0 0.0
    %903 = vmatprep.subr.mxu0 0.0
    %904 = vmatpush2.msra.mxu0 0.0
    %905 = vmatprep.subr.mxu0 0.0
    %906 = vmatpush2.msra.mxu0 0.0
    %907 = vmatprep.subr.mxu0 0.0
    %908 = vmatpush2.msra.mxu0 0.0
    %909 = vmatprep.subr.mxu0 0.0
    %910 = vmatpush2.msra.mxu0 0.0
    %911 = vmatprep.subr.mxu0 0.0
    %912 = vmatpush2.msra.mxu0 0.0
    %913 = vmatprep.subr.mxu0 0.0
    %914 = vmatpush2.msra.mxu0 0.0
    %915 = vmatprep.subr.mxu0 0.0
    %916 = vmatpush2.msra.mxu0 0.0
    %917 = vmatprep.subr.mxu0 0.0
    %918 = vmatpush2.msra.mxu0 0.0
    %919 = vmatprep.subr.mxu0 0.0
    %920 = vmatpush2.msra.mxu0 0.0
    %921 = vmatprep.subr.mxu0 0.0
    %922 = vmatpush2.msra.mxu0 0.0
    %923 = vmatprep.subr.mxu0 0.0
    %924 = vmatpush2.msra.mxu0 0.0
    %925 = vmatprep.subr.mxu0 0.0
    %926 = vmatpush2.msra.mxu0 0.0
    %927 = vmatprep.subr.mxu0 0.0
    %928 = vmatpush2.msra.mxu0 0.0
    %929 = vmatprep.subr.mxu0 0.0
    %930 = vmatpush2.msra.mxu0 0.0
    %931 = vmatprep.mubr.f32.mxu0 0.0
    %932 = vmatmul.mubr.f32.gmra.mxu0 %v795
    %v933 = vpop.f32.mrf.mxu0
    %v934 = vadd.f32 %v786, %v933
    %v935 = vpop.f32.mrf.mxu0
    %v936 = vadd.f32 %v790, %v935
    %937 = vdwg.mxu0
    %v938 = vxor.u32 %v864, 2147483648
    %v939 = vmul.f32 %v938, 1.442695
    %v940 = vpow.pop %v939
    %v941 = vadd.f32 %v940, 1.0
    %v942 = vrcp.pop %v941
    %v943 = vmul.f32 1.0, %v942
    %v944 = vtanh.pop %v934
    %v945 = vxor.u32 %v936, 2147483648
    %v946 = vmul.f32 %v945, 1.442695
    %v947 = vpow.pop %v946
    %v948 = vadd.f32 %v947, 1.0
    %v949 = vrcp.pop %v948
    %v950 = vmul.f32 1.0, %v949
    %v951 = vmul.f32 %v943, %v944
    %v952 = vtanh.pop %v951
    %v953 = vmul.f32 %v950, %v952
    %v954 = vld [vmem:[%s6] sm:$0xff]
    %v955 = vld [vmem:[%s6 + $0x8] sm:$0xff]
    %v956 = vld [vmem:[%s6 + $0x10] sm:$0xff]
    %v957 = vld [vmem:[%s6 + $0x18] sm:$0xff]
    %v958 = vld [vmem:[%s6 + $0x20] sm:$0xff]
    %v959 = vld [vmem:[%s6 + $0x28] sm:$0xff]
    %v960 = vld [vmem:[%s6 + $0x30] sm:$0xff]
    %v961 = vld [vmem:[%s6 + $0x38] sm:$0xff]
    %v962 = vld [vmem:[%s6 + $0x40] sm:$0xff]
    %v963 = vld [vmem:[%s6 + $0x48] sm:$0xff]
    %v964 = vld [vmem:[%s6 + $0x50] sm:$0xff]
    %v965 = vld [vmem:[%s6 + $0x58] sm:$0xff]
    %v966 = vld [vmem:[%s6 + $0x60] sm:$0xff]
    %v967 = vld [vmem:[%s6 + $0x68] sm:$0xff]
    %v968 = vld [vmem:[%s6 + $0x70] sm:$0xff]
    %v969 = vld [vmem:[%s6 + $0x78] sm:$0xff]
    %v971 = vlaneseq
    %v972 = vshrl.u32 %v971, 7
    %v973 = vsub.s32 0, %v972
    %v974 = vrot.slane %v35, %v973
    %976 = vmatprep.subr.mxu0 0.0
    %977 = vmatpush1.msra.mxu0 %v969
    %978 = vmatprep.subr.mxu0 0.0
    %979 = vmatpush1.msra.mxu0 %v968
    %980 = vmatprep.subr.mxu0 0.0
    %981 = vmatpush1.msra.mxu0 %v967
    %982 = vmatprep.subr.mxu0 0.0
    %983 = vmatpush1.msra.mxu0 %v966
    %984 = vmatprep.subr.mxu0 0.0
    %985 = vmatpush1.msra.mxu0 %v965
    %986 = vmatprep.subr.mxu0 0.0
    %987 = vmatpush1.msra.mxu0 %v964
    %988 = vmatprep.subr.mxu0 0.0
    %989 = vmatpush1.msra.mxu0 %v963
    %990 = vmatprep.subr.mxu0 0.0
    %991 = vmatpush1.msra.mxu0 %v962
    %992 = vmatprep.subr.mxu0 0.0
    %993 = vmatpush1.msra.mxu0 %v961
    %994 = vmatprep.subr.mxu0 0.0
    %995 = vmatpush1.msra.mxu0 %v960
    %996 = vmatprep.subr.mxu0 0.0
    %997 = vmatpush1.msra.mxu0 %v959
    %998 = vmatprep.subr.mxu0 0.0
    %999 = vmatpush1.msra.mxu0 %v958
    %1000 = vmatprep.subr.mxu0 0.0
    %1001 = vmatpush1.msra.mxu0 %v957
    %1002 = vmatprep.subr.mxu0 0.0
    %1003 = vmatpush1.msra.mxu0 %v956
    %1004 = vmatprep.subr.mxu0 0.0
    %1005 = vmatpush1.msra.mxu0 %v955
    %1006 = vmatprep.subr.mxu0 0.0
    %1007 = vmatpush1.msra.mxu0 %v954
    %1008 = vmatprep.subr.mxu0 0.0
    %1009 = vmatpush2.msra.mxu0 0.0
    %1010 = vmatprep.subr.mxu0 0.0
    %1011 = vmatpush2.msra.mxu0 0.0
    %1012 = vmatprep.subr.mxu0 0.0
    %1013 = vmatpush2.msra.mxu0 0.0
    %1014 = vmatprep.subr.mxu0 0.0
    %1015 = vmatpush2.msra.mxu0 0.0
    %1016 = vmatprep.subr.mxu0 0.0
    %1017 = vmatpush2.msra.mxu0 0.0
    %1018 = vmatprep.subr.mxu0 0.0
    %1019 = vmatpush2.msra.mxu0 0.0
    %1020 = vmatprep.subr.mxu0 0.0
    %1021 = vmatpush2.msra.mxu0 0.0
    %1022 = vmatprep.subr.mxu0 0.0
    %1023 = vmatpush2.msra.mxu0 0.0
    %1024 = vmatprep.subr.mxu0 0.0
    %1025 = vmatpush2.msra.mxu0 0.0
    %1026 = vmatprep.subr.mxu0 0.0
    %1027 = vmatpush2.msra.mxu0 0.0
    %1028 = vmatprep.subr.mxu0 0.0
    %1029 = vmatpush2.msra.mxu0 0.0
    %1030 = vmatprep.subr.mxu0 0.0
    %1031 = vmatpush2.msra.mxu0 0.0
    %1032 = vmatprep.subr.mxu0 0.0
    %1033 = vmatpush2.msra.mxu0 0.0
    %1034 = vmatprep.subr.mxu0 0.0
    %1035 = vmatpush2.msra.mxu0 0.0
    %1036 = vmatprep.subr.mxu0 0.0
    %1037 = vmatpush2.msra.mxu0 0.0
    %1038 = vmatprep.subr.mxu0 0.0
    %1039 = vmatpush2.msra.mxu0 0.0
    %1040 = vmatprep.mubr.f32.mxu0 0.0
    %1041 = vmatmul.mubr.f32.gmra.mxu0 %v953
    %v1042 = vpop.f32.mrf.mxu0
    %v1043 = vadd.f32 %v974, %v1042
    %v1044 = vpop.f32.mrf.mxu0
    %1045 = vdwg.mxu0
    %vm1046 = vcmask 58368
    %1047 = vst.msk [vmem:[#allocation5] sm:$0x3] %vm1046, %v1043
    // Predicated region
    $region34: #{tpu_custom_call.1} parent=1 // pred_check
      _
    $region35: #{tpu_custom_call.1} parent=1 // pred_check_branch
      %1049 = sbr.rel (0) target = $region37
    $region36: #{tpu_custom_call.1} parent=1 // pred_region
      %s1051 = ssub.s32 32, 32
      %1052 = vsyncadd [#allocation6], %s1051
      %s1054 = sshll.u32 [#allocation5], 4
      %s1055 = int_to_ptr.vmem [resolvable:$true] %s1054
      %1057 = dma.vmem_to_hbm [thread:$0]  %s1055, 32, %s8, [#allocation6]
    $region37: #{tpu_custom_call.1} parent=1 // pred_fallthru
      _
    // Predicated region
    $region38: #{tpu_custom_call.1} parent=1 // pred_check
      _
    $region39: #{tpu_custom_call.1} parent=1 // pred_check_branch
      %1059 = sbr.rel (0) target = $region41
    $region40: #{tpu_custom_call.1} parent=1 // pred_region
      %1060 = dma.done [#allocation6], 32
    $region41: #{tpu_custom_call.1} parent=1 // pred_fallthru
      _
    %1061 = vsyncpa [#allocation6], 1

</llo_original>
